<compile_context>
chip_gen: v5e
topology: v5e:2x2
jax: 0.10.0
libtpu: 0.0.40
codegen_flags: <defaults>
</compile_context>

<pallas_src>
import functools
import math

import jax
import jax.numpy as jnp
from jax.experimental import pallas as pl
from jax.experimental.pallas import tpu as pltpu


# ----------------------------------------------------------------------------
# Kernel 1: tiled linear (in-projection), bf16 MXU + f32 accumulation.
# ----------------------------------------------------------------------------
def _linear_kernel(x_ref, w_ref, b_ref, out_ref):
    # x: (1, TS, E_in) bf16, w: (E_in, E_out) bf16, b: (1, E_out) f32
    y = jnp.dot(x_ref[0], w_ref[...], preferred_element_type=jnp.float32)
    out_ref[0] = (y + b_ref[...]).astype(out_ref.dtype)


def _linear(x, w, b, *, ts=128, out_dtype=jnp.bfloat16):
    B, S, Ein = x.shape
    Eout = w.shape[1]
    assert S % ts == 0
    return pl.pallas_call(
        _linear_kernel,
        out_shape=jax.ShapeDtypeStruct((B, S, Eout), out_dtype),
        grid_spec=pltpu.PrefetchScalarGridSpec(
            num_scalar_prefetch=0,
            grid=(B, S // ts),
            in_specs=[
                pl.BlockSpec((1, ts, Ein), lambda b, i: (b, i, 0)),
                pl.BlockSpec((Ein, Eout), lambda b, i: (0, 0)),
                pl.BlockSpec((1, Eout), lambda b, i: (0, 0)),
            ],
            out_specs=pl.BlockSpec((1, ts, Eout), lambda b, i: (b, i, 0)),
        ),
        compiler_params=pltpu.CompilerParams(
            dimension_semantics=("parallel", "parallel")),
    )(x.astype(jnp.bfloat16), w.astype(jnp.bfloat16), b.astype(jnp.float32))


# ----------------------------------------------------------------------------
# Kernel 2: flash multi-head attention + fused output projection.
# q is already pre-scaled by softmax_scale (folded into Wq in the wrapper).
# ----------------------------------------------------------------------------
def _flash_mha_kernel(q_ref, k_ref, v_ref, wo_ref, bo_ref, out_ref,
                      m_sc, l_sc, acc_sc, *, num_heads):
    ki = pl.program_id(2)
    TQ = q_ref.shape[1]
    E = q_ref.shape[2]
    D = E // num_heads

    @pl.when(ki == 0)
    def _init():
        m_sc[...] = jnp.full(m_sc.shape, -jnp.inf, dtype=m_sc.dtype)
        l_sc[...] = jnp.zeros(l_sc.shape, dtype=l_sc.dtype)
        acc_sc[...] = jnp.zeros(acc_sc.shape, dtype=acc_sc.dtype)

    q = q_ref[0]          # (TQ, E) bf16, pre-scaled
    k = k_ref[0]          # (TK, E) bf16
    v = v_ref[0]          # (TK, E) bf16

    for h in range(num_heads):
        sl = slice(h * D, (h + 1) * D)
        q_h = q[:, sl]                                   # (TQ, D)
        k_h = k[:, sl]                                   # (TK, D)
        v_h = v[:, sl]                                   # (TK, D)
        # scores: contract head_dim on the MXU (no explicit transpose)
        s = jax.lax.dot_general(
            q_h, k_h, (((1,), (1,)), ((), ())),
            preferred_element_type=jnp.float32)          # (TQ, TK) f32
        m_prev = m_sc[h]                                 # (TQ, 1)
        m_new = jnp.maximum(m_prev, jnp.max(s, axis=-1, keepdims=True))
        alpha = jnp.exp(m_prev - m_new)                  # (TQ, 1)
        p = jnp.exp(s - m_new)                           # (TQ, TK) f32
        l_sc[h] = alpha * l_sc[h] + jnp.sum(p, axis=-1, keepdims=True)
        acc_sc[h] = alpha * acc_sc[h] + jnp.dot(
            p.astype(v_h.dtype), v_h, preferred_element_type=jnp.float32)
        m_sc[h] = m_new

    @pl.when(ki == pl.num_programs(2) - 1)
    def _finalize():
        out_acc = jnp.zeros((TQ, E), jnp.float32)
        for h in range(num_heads):
            inv_l = pl.reciprocal(l_sc[h], approx=True)          # (TQ, 1)
            ctx_h = (acc_sc[h] * inv_l).astype(jnp.bfloat16)     # (TQ, D)
            w_h = wo_ref[h * D:(h + 1) * D, :]                   # (D, E) bf16
            out_acc = out_acc + jnp.dot(
                ctx_h, w_h, preferred_element_type=jnp.float32)  # lane-dense N=E
        out_ref[0] = (out_acc + bo_ref[...]).astype(out_ref.dtype)


# ----------------------------------------------------------------------------
# Wrapper: FlashMultiheadAttention.forward (batch_first=True).
# ----------------------------------------------------------------------------
def flash_multihead_attention(x_q, x_k, x_v, params, *, num_heads,
                              tq=128, tk=128, ts=128):
    """Returns (out, None) matching the torch module (attn weights not kept)."""
    B, Sq, E = x_q.shape
    Sk = x_k.shape[1]
    assert x_v.shape == x_k.shape and x_k.shape[-1] == E and x_k.shape[0] == B
    assert E % num_heads == 0
    D = E // num_heads
    assert D % 8 == 0 and D <= 128
    assert Sq % tq == 0 and Sk % tk == 0
    scale = 1.0 / math.sqrt(D)   # flash_attn default softmax_scale

    # packed in-projection (torch's in_proj_weight chunked into W_q / W_k / W_v).
    # Softmax scale is folded into the q projection (scores == (q*scale)·k^T),
    # removing the per-step (TQ,TK) scale multiply from the attention kernel.
    q = _linear(x_q, params["wq"] * scale, params["bq"] * scale, ts=ts)
    # k and v share the same source tensor: project both with one packed matmul.
    wkv = jnp.concatenate([params["wk"], params["wv"]], axis=1)   # (E, 2E)
    bkv = jnp.concatenate([params["bk"], params["bv"]], axis=1)   # (1, 2E)
    kv = _linear(x_k, wkv, bkv, ts=ts)                            # (B, Sk, 2E)

    kern = functools.partial(_flash_mha_kernel, num_heads=num_heads)

    # TODO(synk): causal masking and the key_padding_mask/unpad_input varlen
    # path of flash_attn_unpadded_kvpacked_func are not implemented (the module
    # is used with causal=False, key_padding_mask=None here).
    out = pl.pallas_call(
        kern,
        out_shape=jax.ShapeDtypeStruct((B, Sq, E), jnp.float32),
        grid_spec=pltpu.PrefetchScalarGridSpec(
            num_scalar_prefetch=0,
            grid=(B, Sq // tq, Sk // tk),
            in_specs=[
                pl.BlockSpec((1, tq, E), lambda b, qi, ki: (b, qi, 0)),   # q
                pl.BlockSpec((1, tk, E), lambda b, qi, ki: (b, ki, 0)),   # k (lanes [0, E))
                pl.BlockSpec((1, tk, E), lambda b, qi, ki: (b, ki, 1)),   # v (lanes [E, 2E))
                pl.BlockSpec((E, E), lambda b, qi, ki: (0, 0)),           # Wo
                pl.BlockSpec((1, E), lambda b, qi, ki: (0, 0)),           # bo
            ],
            out_specs=pl.BlockSpec((1, tq, E), lambda b, qi, ki: (b, qi, 0)),
            scratch_shapes=[
                pltpu.VMEM((num_heads, tq, 1), jnp.float32),   # running max
                pltpu.VMEM((num_heads, tq, 1), jnp.float32),   # running sum
                pltpu.VMEM((num_heads, tq, D), jnp.float32),   # output accum
            ],
        ),
        compiler_params=pltpu.CompilerParams(
            dimension_semantics=("parallel", "parallel", "arbitrary")),
    )(q, kv, kv, params["wo"].astype(jnp.bfloat16), params["bo"].astype(jnp.float32))

    return out, None


# ----------------------------------------------------------------------------
# Deterministic parameter init (weights stored (E_in, E_out), i.e. W^T vs torch).
# ----------------------------------------------------------------------------
def init_params(key, E):
    ks = jax.random.split(key, 8)
    sw = 1.0 / math.sqrt(E)

    def w(k):
        return sw * jax.random.normal(k, (E, E), jnp.float32)

    def b(k):
        return 0.02 * jax.random.normal(k, (1, E), jnp.float32)

    return dict(wq=w(ks[0]), bq=b(ks[1]),
                wk=w(ks[2]), bk=b(ks[3]),
                wv=w(ks[4]), bv=b(ks[5]),
                wo=w(ks[6]), bo=b(ks[7]))


# ----------------------------------------------------------------------------
# Plain-JAX reference (standard softmax attention) for cross-check.
# ----------------------------------------------------------------------------
def _reference(x_q, x_k, x_v, params, num_heads):
    E = x_q.shape[-1]
    D = E // num_heads
    scale = 1.0 / math.sqrt(D)
    bf = jnp.bfloat16
    hi = jax.lax.Precision.HIGHEST

    def lin(x, w, b):
        y = jnp.dot(x.astype(bf), w.astype(bf),
                    preferred_element_type=jnp.float32) + b
        return y.astype(bf).astype(jnp.float32)   # mirror kernel's bf16 q/k/v

    q = lin(x_q, params["wq"], params["bq"])
    k = lin(x_k, params["wk"], params["bk"])
    v = lin(x_v, params["wv"], params["bv"])
    B, Sq, _ = q.shape
    Sk = k.shape[1]
    q = q.reshape(B, Sq, num_heads, D).transpose(0, 2, 1, 3)
    k = k.reshape(B, Sk, num_heads, D).transpose(0, 2, 1, 3)
    v = v.reshape(B, Sk, num_heads, D).transpose(0, 2, 1, 3)
    s = jnp.einsum('bhqd,bhkd->bhqk', q, k, precision=hi) * scale
    p = jax.nn.softmax(s, axis=-1)
    ctx = jnp.einsum('bhqk,bhkd->bhqd', p, v, precision=hi)
    ctx = ctx.transpose(0, 2, 1, 3).reshape(B, Sq, E)
    out = jnp.dot(ctx.astype(bf), params["wo"].astype(bf),
                  preferred_element_type=jnp.float32) + params["bo"]
    return out


if __name__ == "__main__":
    key = jax.random.PRNGKey(0)
    kq, kkv, kp = jax.random.split(key, 3)

    # small shapes: batch=2, seq=256, embed=128, heads=4 (head_dim=32, %8==0)
    B, Sq, Sk, E, H = 2, 256, 256, 128, 4

    x_q = jax.random.normal(kq, (B, Sq, E), jnp.float32)
    x_kv = jax.random.normal(kkv, (B, Sk, E), jnp.float32)  # cross-attn k/v source

    params = init_params(kp, E)

    out, attn_w = flash_multihead_attention(x_q, x_kv, x_kv, params, num_heads=H)
    out = jax.block_until_ready(out)
    assert out.shape == (B, Sq, E)
    assert attn_w is None

    ref = _reference(x_q, x_kv, x_kv, params, H)
    err = float(jnp.max(jnp.abs(out - ref)))
    tol = 2e-2 * max(1.0, float(jnp.max(jnp.abs(ref))))
    assert err < tol, f"max abs err {err} vs tol {tol}"

    print("KERNEL_OK")
</pallas_src>

<mosaic_0001>
module attributes {stable_mosaic.version = 11 : i64} {
  func.func @_linear_kernel(%arg0: i32, %arg1: i32, %arg2: memref<1x128x128xbf16, #tpu.memory_space<vmem>>, %arg3: memref<128x128xbf16, #tpu.memory_space<vmem>>, %arg4: memref<1x128xf32, #tpu.memory_space<vmem>>, %arg5: memref<1x128x128xbf16, #tpu.memory_space<vmem>>) attributes {dimension_semantics = [#tpu.dimension_semantics<parallel>, #tpu.dimension_semantics<parallel>], iteration_bounds = array<i64: 2, 2>, scalar_prefetch = 0 : i64, scratch_operands = 0 : i64, tpu.core_type = #tpu.core_type<tc>, window_params = [{transform_indices = @transform_0, window_bounds = array<i64: 1, 128, 128>}, {pipeline_mode = #tpu.pipeline_mode<synchronous>, transform_indices = @transform_1, window_bounds = array<i64: 128, 128>}, {pipeline_mode = #tpu.pipeline_mode<synchronous>, transform_indices = @transform_2, window_bounds = array<i64: 1, 128>}, {transform_indices = @transform_3, window_bounds = array<i64: 1, 128, 128>}]} {
    %c0 = arith.constant 0 : index
    %c0_0 = arith.constant 0 : index
    %c0_1 = arith.constant 0 : index
    %0 = vector.load %arg2[%c0, %c0_0, %c0_1] : memref<1x128x128xbf16, #tpu.memory_space<vmem>>, vector<1x128x128xbf16>
    %1 = vector.shape_cast %0 : vector<1x128x128xbf16> to vector<128x128xbf16>
    %c0_2 = arith.constant 0 : index
    %c0_3 = arith.constant 0 : index
    %2 = vector.load %arg3[%c0_2, %c0_3] : memref<128x128xbf16, #tpu.memory_space<vmem>>, vector<128x128xbf16>
    %cst = arith.constant dense<0.000000e+00> : vector<128x128xf32>
    %3 = tpu.matmul %1, %2, %cst {dimension_numbers = #tpu.dot_dimension_numbers<[1], [0], [0], [1], [0, 0, 1, 1], [], []>} : vector<128x128xbf16>, vector<128x128xbf16>, vector<128x128xf32> -> vector<128x128xf32>
    %c0_4 = arith.constant 0 : index
    %c0_5 = arith.constant 0 : index
    %4 = vector.load %arg4[%c0_4, %c0_5] : memref<1x128xf32, #tpu.memory_space<vmem>>, vector<1x128xf32>
    %5 = vector.broadcast %4 : vector<1x128xf32> to vector<128x128xf32>
    %6 = arith.addf %3, %5 : vector<128x128xf32>
    %7 = arith.truncf %6 : vector<128x128xf32> to vector<128x128xbf16>
    %c0_6 = arith.constant 0 : index
    %c0_7 = arith.constant 0 : index
    %c0_8 = arith.constant 0 : index
    %8 = vector.load %arg5[%c0_6, %c0_7, %c0_8] : memref<1x128x128xbf16, #tpu.memory_space<vmem>>, vector<1x128x128xbf16>
    %9 = vector.shape_cast %8 : vector<1x128x128xbf16> to vector<128x128xbf16>
    %10 = vector.shape_cast %7 : vector<128x128xbf16> to vector<1x128x128xbf16>
    tpu.vector_store %arg5[%c0_6, %c0_7, %c0_8], %10 {strides = array<i32>} : memref<1x128x128xbf16, #tpu.memory_space<vmem>>, vector<1x128x128xbf16>,
    return
  }
  func.func @transform_0(%arg0: i32, %arg1: i32) -> (i32, i32, i32) {
    %c0_i32 = arith.constant 0 : i32
    %c0_i32_0 = arith.constant 0 : i32
    return %arg0, %arg1, %c0_i32 : i32, i32, i32
  }
  func.func @transform_1(%arg0: i32, %arg1: i32) -> (i32, i32) {
    %c0_i32 = arith.constant 0 : i32
    %c0_i32_0 = arith.constant 0 : i32
    %c0_i32_1 = arith.constant 0 : i32
    return %c0_i32, %c0_i32_0 : i32, i32
  }
  func.func @transform_2(%arg0: i32, %arg1: i32) -> (i32, i32) {
    %c0_i32 = arith.constant 0 : i32
    %c0_i32_0 = arith.constant 0 : i32
    %c0_i32_1 = arith.constant 0 : i32
    return %c0_i32, %c0_i32_0 : i32, i32
  }
  func.func @transform_3(%arg0: i32, %arg1: i32) -> (i32, i32, i32) {
    %c0_i32 = arith.constant 0 : i32
    %c0_i32_0 = arith.constant 0 : i32
    return %arg0, %arg1, %c0_i32 : i32, i32, i32
  }
}

</mosaic_0001>

<llo_original>
// kernel: tpu_custom_call.1
$region0: #{tpu_custom_call.1}
  #allocation0 [shape = 'u32[]', space=smem, size = 0x4, offset = 0x4, fixed_abs, tag = 'smem constant byte address 0x4 - core index']
  #allocation1 [shape = 'u32[72,128]{1,0:T(1,128)}', space=vmem, size = 0x9000, scoped, tag = 'internal scratch']
  %s0 = inlined_call_operand.hbm [shape: bf16[2,256,128], index: 0, kind: input, shape index: {}]
  %s1 = inlined_call_operand.hbm [shape: bf16[128,128], index: 1, kind: input, shape index: {}]
  %s2 = inlined_call_operand.vmem [shape: f32[1,128], index: 2, kind: input, shape index: {}]
  %s3 = inlined_call_operand.hbm [shape: bf16[2,256,128], index: 3, kind: output, shape index: {}]
  %s4 = sld [smem:[#allocation0]]
  $region53: #{tpu_custom_call.1} parent=0
    _
  %s6 = ssub.s32 1, %s4
  %s7 = scalar_select 0, %s6, %s4
  $region1: #{tpu_custom_call.1} parent=0
    #allocation2 [shape = 'u8[65536]{0}', space=vmem, size = 0x10000, scoped, tag = 'input window, operand 0']
    #allocation3 [shape = 's32[2]{0}', space=sflag, size = 0x8, scoped, tag = 'scoped memory for tpu_custom_call.1']
    #allocation4 [shape = 's32[2]{0}', space=sflag, size = 0x8, scoped, tag = 'scoped memory for tpu_custom_call.1']
    #allocation5 [shape = 'u8[32768]{0}', space=vmem, size = 0x8000, scoped, tag = 'input window, operand 1, single buffered']
    #allocation6 [shape = 's32[1]{0}', space=sflag, size = 0x4, scoped, tag = 'scoped memory for tpu_custom_call.1']
    #allocation7 [shape = 'u8[65536]{0}', space=vmem, size = 0x10000, scoped, tag = 'output window, operand 0']
    %8 = vsyncpa [#allocation3], 0
    %s9 = scalar_lea.sflag [#allocation3], 1
    %10 = vsyncpa %s9, 0
    %11 = vsyncpa [#allocation6], 0
    %12 = vsyncpa [#allocation4], 0
    %s13 = scalar_lea.sflag [#allocation4], 1
    %14 = vsyncpa %s13, 0
    loop: start=0, step=1, limit=6
    $region2: #{tpu_custom_call.1} parent=1 // loop_pre_header
      _
    $region3: #{tpu_custom_call.1} parent=1 // loop_header
      %s16 = sphi 0, %s20
      %p17 = scmp.ge.s32.totalorder %s16, 6
      %s23 = sphi 0, %s35
      %s24 = sphi 0, %s31
      %s25 = sphi 0, %s23
      %s26 = sphi 0, %s24
      %s27 = sphi 0, %s25
      %s28 = sphi 0, %s26
      %s40 = sphi 0, %s42
      %s43 = sphi 0, %s40
      %s44 = sphi 0, %s43
      %s60 = sphi 0, %s44
      %s64 = sphi 0, %s64
      %s66 = sphi 0, %s64
      %s67 = sphi 0, %s66
      %s81 = sphi 0, %s67
      %s85 = sphi 0, %s85
      %s87 = sphi 0, %s85
      %s88 = sphi 0, %s87
      %s102 = sphi 0, %s88
      %s110 = sphi 0, %s112
      %s113 = sphi 0, %s110
      %s114 = sphi 0, %s113
      %s130 = sphi 0, %s114
    $region4: #{tpu_custom_call.1} parent=1 // loop_header_branch
      %19 = sbr.rel (%p17) target = $region8
    $region5: #{tpu_custom_call.1} parent=1 // loop_body
      %s21 = ssub.s32 %s16, 1
      %s22 = ssub.s32 %s16, 2
      %s29 = sadd.s32 1, %s24
      %p30 = scmp.ge.s32.totalorder %s29, 2
      %s31 = scalar_select %p30, 0, %s29
      %s32 = sadd.s32 1, %s23
      %s33 = scalar_select %p30, %s32, %s23
      %p34 = scmp.ge.s32.totalorder %s33, 2
      %s35 = scalar_select %p34, 0, %s33
      %s36 = ssub.s32 %s23, %s35
      %s37 = ssub.s32 %s24, %s31
      %s38 = sor.u32 %s36, %s37
      %p39 = scmp.eq.s32.totalorder %s38, 0
      %s41 = sadd.s32 %s40, 1
      %s42 = scalar_select %p39, %s40, %s41
      %p45 = pneg %p39
      %p46 = scmp.eq.s32.totalorder %s16, 3
      %p47 = por %p45, %p46
      %p48 = scmp.ne.s32.totalorder %s40, %s43
      %p49 = scmp.eq.s32.totalorder %s16, 0
      %p50 = por %p48, %p49
      %p51 = scmp.ne.s32.totalorder %s40, %s43
      %p52 = scmp.eq.s32.totalorder %s21, 3
      %p53 = por %p51, %p52
      %p54 = scmp.ne.s32.totalorder %s43, %s44
      %p55 = scmp.eq.s32.totalorder %s21, 0
      %p56 = por %p54, %p55
      %p57 = scmp.ne.s32.totalorder %s43, %s44
      %p58 = scmp.eq.s32.totalorder %s22, 3
      %p59 = por %p57, %p58
      %p61 = scmp.ne.s32.totalorder %s44, %s60
      %p62 = scmp.eq.s32.totalorder %s22, 0
      %p63 = por %p61, %p62
      %s65 = sadd.s32 %s64, 1
      %p68 = scmp.eq.s32.totalorder %s16, 3
      %p69 = scmp.ne.s32.totalorder %s64, %s66
      %p70 = scmp.eq.s32.totalorder %s16, 0
      %p71 = por %p69, %p70
      %p72 = scmp.ne.s32.totalorder %s64, %s66
      %p73 = scmp.eq.s32.totalorder %s21, 3
      %p74 = por %p72, %p73
      %p75 = scmp.ne.s32.totalorder %s66, %s67
      %p76 = scmp.eq.s32.totalorder %s21, 0
      %p77 = por %p75, %p76
      %p78 = scmp.ne.s32.totalorder %s66, %s67
      %p79 = scmp.eq.s32.totalorder %s22, 3
      %p80 = por %p78, %p79
      %p82 = scmp.ne.s32.totalorder %s67, %s81
      %p83 = scmp.eq.s32.totalorder %s22, 0
      %p84 = por %p82, %p83
      %s86 = sadd.s32 %s85, 1
      %p89 = scmp.eq.s32.totalorder %s16, 3
      %p90 = scmp.ne.s32.totalorder %s85, %s87
      %p91 = scmp.eq.s32.totalorder %s16, 0
      %p92 = por %p90, %p91
      %p93 = scmp.ne.s32.totalorder %s85, %s87
      %p94 = scmp.eq.s32.totalorder %s21, 3
      %p95 = por %p93, %p94
      %p96 = scmp.ne.s32.totalorder %s87, %s88
      %p97 = scmp.eq.s32.totalorder %s21, 0
      %p98 = por %p96, %p97
      %p99 = scmp.ne.s32.totalorder %s87, %s88
      %p100 = scmp.eq.s32.totalorder %s22, 3
      %p101 = por %p99, %p100
      %p103 = scmp.ne.s32.totalorder %s88, %s102
      %p104 = scmp.eq.s32.totalorder %s22, 0
      %p105 = por %p103, %p104
      %s106 = ssub.s32 %s23, %s35
      %s107 = ssub.s32 %s24, %s31
      %s108 = sor.u32 %s106, %s107
      %p109 = scmp.eq.s32.totalorder %s108, 0
      %s111 = sadd.s32 %s110, 1
      %s112 = scalar_select %p109, %s110, %s111
      %p115 = pneg %p109
      %p116 = scmp.eq.s32.totalorder %s16, 3
      %p117 = por %p115, %p116
      %p118 = scmp.ne.s32.totalorder %s110, %s113
      %p119 = scmp.eq.s32.totalorder %s16, 0
      %p120 = por %p118, %p119
      %p121 = scmp.ne.s32.totalorder %s110, %s113
      %p122 = scmp.eq.s32.totalorder %s21, 3
      %p123 = por %p121, %p122
      %p124 = scmp.ne.s32.totalorder %s113, %s114
      %p125 = scmp.eq.s32.totalorder %s21, 0
      %p126 = por %p124, %p125
      %p127 = scmp.ne.s32.totalorder %s113, %s114
      %p128 = scmp.eq.s32.totalorder %s22, 3
      %p129 = por %p127, %p128
      %p131 = scmp.ne.s32.totalorder %s114, %s130
      %p132 = scmp.eq.s32.totalorder %s22, 0
      %p133 = por %p131, %p132
      %p134 = scmp.le.s32.totalorder 1, %s16
      %p135 = scmp.lt.s32.totalorder %s16, 5
      %p136 = pnand %p134, %p135
      %p137 = pneg %p136
      // Predicated region
      $region9: #{tpu_custom_call.1} parent=5 // pred_check
        _
      $region10: #{tpu_custom_call.1} parent=5 // pred_check_branch
        %139 = sbr.rel (%p136) target = $region12
      $region11: #{tpu_custom_call.1} parent=5 // pred_region
        %s140 = ssub.s32 %s16, 1
        // Predicated region
        $region13: #{tpu_custom_call.1} parent=11 // pred_check
          %p141 = pneg %p77
        $region14: #{tpu_custom_call.1} parent=11 // pred_check_branch
          %143 = sbr.rel (%p141) target = $region16
        $region15: #{tpu_custom_call.1} parent=11 // pred_region
          %145 = vsyncadd [#allocation6], 0
          %s146 = sshll.u32 %s1, 4
          %s147 = int_to_ptr.hbm [resolvable:$true] %s146
          %s148 = sshll.u32 [#allocation5], 4
          %s149 = int_to_ptr.vmem [resolvable:$true] %s148
          %154 = dma.hbm_to_vmem [thread:$0]  %s147, 1024, %s149, [#allocation6], 64, 64, 4
        $region16: #{tpu_custom_call.1} parent=11 // pred_fallthru
          _
        // Predicated region
        $region17: #{tpu_custom_call.1} parent=11 // pred_check
          %p155 = pneg %p98
        $region18: #{tpu_custom_call.1} parent=11 // pred_check_branch
          %157 = sbr.rel (%p155) target = $region20
        $region19: #{tpu_custom_call.1} parent=11 // pred_region
          _
        $region20: #{tpu_custom_call.1} parent=11 // pred_fallthru
          _
      $region12: #{tpu_custom_call.1} parent=5 // pred_fallthru
        _
      %p158 = scmp.lt.s32.totalorder %s16, 4
      // Predicated region
      $region21: #{tpu_custom_call.1} parent=5 // pred_check
        %p159 = pneg %p158
      $region22: #{tpu_custom_call.1} parent=5 // pred_check_branch
        %161 = sbr.rel (%p159) target = $region24
      $region23: #{tpu_custom_call.1} parent=5 // pred_region
        // Predicated region
        $region25: #{tpu_custom_call.1} parent=23 // pred_check
          %p162 = pneg %p50
        $region26: #{tpu_custom_call.1} parent=23 // pred_check_branch
          %164 = sbr.rel (%p162) target = $region28
        $region27: #{tpu_custom_call.1} parent=23 // pred_region
          %s165 = sand.u32 %s40, 1
          %s166 = scalar_lea.sflag [#allocation3], %s165
          %s167 = sand.u32 %s40, 1
          %s168 = smul.addr %s167, 64
          %s169 = scalar_lea.vmem [#allocation2], %s168
          %s170 = smul.u32 16, %s24
          %172 = vsyncadd %s166, 0
          %s173 = smul.addr %s23, 32
          %s174 = sadd.s32 %s170, %s173
          %s175 = smul.addr %s174, 4
          %s176 = scalar_lea.hbm %s0, %s175
          %s177 = sshll.u32 %s176, 4
          %s178 = int_to_ptr.hbm [resolvable:$true] %s177
          %s179 = sshll.u32 %s169, 4
          %s180 = int_to_ptr.vmem [resolvable:$true] %s179
          %185 = dma.hbm_to_vmem [thread:$0]  %s178, 1024, %s180, %s166, 64, 64, 4
        $region28: #{tpu_custom_call.1} parent=23 // pred_fallthru
          _
      $region24: #{tpu_custom_call.1} parent=5 // pred_fallthru
        _
      %p186 = scmp.le.s32.totalorder 1, %s16
      %p187 = scmp.lt.s32.totalorder %s16, 5
      %p188 = pnand %p186, %p187
      %p189 = pneg %p188
      // Predicated region
      $region29: #{tpu_custom_call.1} parent=5 // pred_check
        _
      $region30: #{tpu_custom_call.1} parent=5 // pred_check_branch
        %191 = sbr.rel (%p188) target = $region32
      $region31: #{tpu_custom_call.1} parent=5 // pred_region
        %s192 = ssub.s32 %s16, 1
        %s193 = sand.u32 %s43, 1
        %s194 = scalar_lea.sflag [#allocation3], %s193
        %s195 = sand.u32 %s43, 1
        %s196 = smul.addr %s195, 64
        %s197 = scalar_lea.vmem [#allocation2], %s196
        // Predicated region
        $region33: #{tpu_custom_call.1} parent=31 // pred_check
          %p198 = pneg %p56
        $region34: #{tpu_custom_call.1} parent=31 // pred_check_branch
          %200 = sbr.rel (%p198) target = $region36
        $region35: #{tpu_custom_call.1} parent=31 // pred_region
          %202 = dma.done %s194, 1024
        $region36: #{tpu_custom_call.1} parent=31 // pred_fallthru
          _
        // Predicated region
        $region37: #{tpu_custom_call.1} parent=31 // pred_check
          %p203 = pneg %p77
        $region38: #{tpu_custom_call.1} parent=31 // pred_check_branch
          %205 = sbr.rel (%p203) target = $region40
        $region39: #{tpu_custom_call.1} parent=31 // pred_region
          %207 = dma.done [#allocation6], 1024
        $region40: #{tpu_custom_call.1} parent=31 // pred_fallthru
          _
        %s208 = sand.u32 %s43, 1
        %s209 = scalar_lea.sflag [#allocation3], %s208
        %s210 = sand.u32 %s43, 1
        %s211 = smul.addr %s210, 64
        %s212 = scalar_lea.vmem [#allocation2], %s211
        %p213 = pneg %p56
        %p214 = pneg %p53
        %p215 = pneg %p77
        %p216 = pneg %p74
        %p217 = pneg %p98
        %p218 = pneg %p95
        %p219 = pneg %p126
        %p220 = pneg %p123
        %s221 = sand.u32 %s113, 1
        %s222 = scalar_lea.sflag [#allocation4], %s221
        %s223 = sand.u32 %s113, 1
        %s224 = smul.addr %s223, 64
        %s225 = scalar_lea.vmem [#allocation7], %s224
        %s226 = smul.u32 16, %s26
        %s227 = smul.u32 16, %s26
        %v228 = vld [vmem:[%s197] sm:$0xf]
        %v229 = vld [vmem:[%s197 + $0x4] sm:$0xf]
        %v230 = vld [vmem:[%s197 + $0x8] sm:$0xf]
        %v231 = vld [vmem:[%s197 + $0xc] sm:$0xf]
        %v232 = vld [vmem:[%s197 + $0x10] sm:$0xf]
        %v233 = vld [vmem:[%s197 + $0x14] sm:$0xf]
        %v234 = vld [vmem:[%s197 + $0x18] sm:$0xf]
        %v235 = vld [vmem:[%s197 + $0x1c] sm:$0xf]
        %v236 = vld [vmem:[%s197 + $0x20] sm:$0xf]
        %v237 = vld [vmem:[%s197 + $0x24] sm:$0xf]
        %v238 = vld [vmem:[%s197 + $0x28] sm:$0xf]
        %v239 = vld [vmem:[%s197 + $0x2c] sm:$0xf]
        %v240 = vld [vmem:[%s197 + $0x30] sm:$0xf]
        %v241 = vld [vmem:[%s197 + $0x34] sm:$0xf]
        %v242 = vld [vmem:[%s197 + $0x38] sm:$0xf]
        %v243 = vld [vmem:[%s197 + $0x3c] sm:$0xf]
        %v244 = vld [vmem:[#allocation5] sm:$0xf]
        %v245 = vld [vmem:[#allocation5 + $0x4] sm:$0xf]
        %v246 = vld [vmem:[#allocation5 + $0x8] sm:$0xf]
        %v247 = vld [vmem:[#allocation5 + $0xc] sm:$0xf]
        %v248 = vld [vmem:[#allocation5 + $0x10] sm:$0xf]
        %v249 = vld [vmem:[#allocation5 + $0x14] sm:$0xf]
        %v250 = vld [vmem:[#allocation5 + $0x18] sm:$0xf]
        %v251 = vld [vmem:[#allocation5 + $0x1c] sm:$0xf]
        %v252 = vld [vmem:[#allocation5 + $0x20] sm:$0xf]
        %v253 = vld [vmem:[#allocation5 + $0x24] sm:$0xf]
        %v254 = vld [vmem:[#allocation5 + $0x28] sm:$0xf]
        %v255 = vld [vmem:[#allocation5 + $0x2c] sm:$0xf]
        %v256 = vld [vmem:[#allocation5 + $0x30] sm:$0xf]
        %v257 = vld [vmem:[#allocation5 + $0x34] sm:$0xf]
        %v258 = vld [vmem:[#allocation5 + $0x38] sm:$0xf]
        %v259 = vld [vmem:[#allocation5 + $0x3c] sm:$0xf]
        %v260 = vld [vmem:[%s2] sm:$0x1]
        %v262 = vperm.slane %v260, 0
        %v280 = vunpack.c.l.b16 %v228
        %v281 = vunpack.c.l.b16 %v229
        %v282 = vunpack.c.l.b16 %v230
        %v283 = vunpack.c.l.b16 %v231
        %v284 = vunpack.c.l.b16 %v232
        %v285 = vunpack.c.l.b16 %v233
        %v286 = vunpack.c.l.b16 %v234
        %v287 = vunpack.c.l.b16 %v235
        %v288 = vunpack.c.l.b16 %v236
        %v289 = vunpack.c.l.b16 %v237
        %v290 = vunpack.c.l.b16 %v238
        %v291 = vunpack.c.l.b16 %v239
        %v292 = vunpack.c.l.b16 %v240
        %v293 = vunpack.c.l.b16 %v241
        %v294 = vunpack.c.l.b16 %v242
        %v295 = vunpack.c.l.b16 %v243
        %v296 = vpack.c.b16 %v281, %v280
        %v297 = vpack.c.b16 %v283, %v282
        %v298 = vpack.c.b16 %v285, %v284
        %v299 = vpack.c.b16 %v287, %v286
        %v300 = vpack.c.b16 %v289, %v288
        %v301 = vpack.c.b16 %v291, %v290
        %v302 = vpack.c.b16 %v293, %v292
        %v303 = vpack.c.b16 %v295, %v294
        %v328 = vunpack.c.l.b16 %v244
        %v329 = vunpack.c.l.b16 %v245
        %v330 = vunpack.c.l.b16 %v246
        %v331 = vunpack.c.l.b16 %v247
        %v332 = vunpack.c.l.b16 %v248
        %v333 = vunpack.c.l.b16 %v249
        %v334 = vunpack.c.l.b16 %v250
        %v335 = vunpack.c.l.b16 %v251
        %v336 = vunpack.c.l.b16 %v252
        %v337 = vunpack.c.l.b16 %v253
        %v338 = vunpack.c.l.b16 %v254
        %v339 = vunpack.c.l.b16 %v255
        %v340 = vunpack.c.l.b16 %v256
        %v341 = vunpack.c.l.b16 %v257
        %v342 = vunpack.c.l.b16 %v258
        %v343 = vunpack.c.l.b16 %v259
        %v344 = vpack.c.b16 %v329, %v328
        %v345 = vpack.c.b16 %v331, %v330
        %v346 = vpack.c.b16 %v333, %v332
        %v347 = vpack.c.b16 %v335, %v334
        %v348 = vpack.c.b16 %v337, %v336
        %v349 = vpack.c.b16 %v339, %v338
        %v350 = vpack.c.b16 %v341, %v340
        %v351 = vpack.c.b16 %v343, %v342
        %360 = vmatpush.bf16.msra.mxu0 %v351
        %361 = vmatpush.bf16.msra.mxu0 %v350
        %362 = vmatpush.bf16.msra.mxu0 %v349
        %363 = vmatpush.bf16.msra.mxu0 %v348
        %364 = vmatpush.bf16.msra.mxu0 %v347
        %365 = vmatpush.bf16.msra.mxu0 %v346
        %366 = vmatpush.bf16.msra.mxu0 %v345
        %367 = vmatpush.bf16.msra.mxu0 %v344
        %368 = vmatmul.bf16.gmra.mxu0 %v296
        %v369 = vpop.f32.mrf.mxu0
        %v370 = vadd.f32 %v262, %v369
        %v371 = vpop.f32.mrf.mxu0
        %v372 = vadd.f32 %v262, %v371
        %373 = vmatmul.bf16.gmra.mxu0 %v297
        %v374 = vpop.f32.mrf.mxu0
        %v375 = vadd.f32 %v262, %v374
        %v376 = vpop.f32.mrf.mxu0
        %v377 = vadd.f32 %v262, %v376
        %378 = vmatmul.bf16.gmra.mxu0 %v298
        %v379 = vpop.f32.mrf.mxu0
        %v380 = vadd.f32 %v262, %v379
        %v381 = vpop.f32.mrf.mxu0
        %v382 = vadd.f32 %v262, %v381
        %383 = vmatmul.bf16.gmra.mxu0 %v299
        %v384 = vpop.f32.mrf.mxu0
        %v385 = vadd.f32 %v262, %v384
        %v386 = vpop.f32.mrf.mxu0
        %v387 = vadd.f32 %v262, %v386
        %388 = vmatmul.bf16.gmra.mxu0 %v300
        %v389 = vpop.f32.mrf.mxu0
        %v390 = vadd.f32 %v262, %v389
        %v391 = vpop.f32.mrf.mxu0
        %v392 = vadd.f32 %v262, %v391
        %393 = vmatmul.bf16.gmra.mxu0 %v301
        %v394 = vpop.f32.mrf.mxu0
        %v395 = vadd.f32 %v262, %v394
        %v396 = vpop.f32.mrf.mxu0
        %v397 = vadd.f32 %v262, %v396
        %398 = vmatmul.bf16.gmra.mxu0 %v302
        %v399 = vpop.f32.mrf.mxu0
        %v400 = vadd.f32 %v262, %v399
        %v401 = vpop.f32.mrf.mxu0
        %v402 = vadd.f32 %v262, %v401
        %403 = vmatmul.bf16.gmra.mxu0 %v303
        %v404 = vpop.f32.mrf.mxu0
        %v405 = vadd.f32 %v262, %v404
        %v406 = vpop.f32.mrf.mxu0
        %v407 = vadd.f32 %v262, %v406
        %408 = vdwg.mxu0
        %v409 = vpack.c.bf16 %v370, %v370
        %v410 = vpack.c.bf16 %v372, %v372
        %v411 = vpack.c.bf16 %v375, %v375
        %v412 = vpack.c.bf16 %v377, %v377
        %v413 = vpack.c.bf16 %v380, %v380
        %v414 = vpack.c.bf16 %v382, %v382
        %v415 = vpack.c.bf16 %v385, %v385
        %v416 = vpack.c.bf16 %v387, %v387
        %v417 = vpack.c.bf16 %v390, %v390
        %v418 = vpack.c.bf16 %v392, %v392
        %v419 = vpack.c.bf16 %v395, %v395
        %v420 = vpack.c.bf16 %v397, %v397
        %v421 = vpack.c.bf16 %v400, %v400
        %v422 = vpack.c.bf16 %v402, %v402
        %v423 = vpack.c.bf16 %v405, %v405
        %v424 = vpack.c.bf16 %v407, %v407
        %425 = vst [vmem:[%s225] sm:$0xf] %v409
        %426 = vst [vmem:[%s225 + $0x4] sm:$0xf] %v410
        %427 = vst [vmem:[%s225 + $0x8] sm:$0xf] %v411
        %428 = vst [vmem:[%s225 + $0xc] sm:$0xf] %v412
        %429 = vst [vmem:[%s225 + $0x10] sm:$0xf] %v413
        %430 = vst [vmem:[%s225 + $0x14] sm:$0xf] %v414
        %431 = vst [vmem:[%s225 + $0x18] sm:$0xf] %v415
        %432 = vst [vmem:[%s225 + $0x1c] sm:$0xf] %v416
        %433 = vst [vmem:[%s225 + $0x20] sm:$0xf] %v417
        %434 = vst [vmem:[%s225 + $0x24] sm:$0xf] %v418
        %435 = vst [vmem:[%s225 + $0x28] sm:$0xf] %v419
        %436 = vst [vmem:[%s225 + $0x2c] sm:$0xf] %v420
        %437 = vst [vmem:[%s225 + $0x30] sm:$0xf] %v421
        %438 = vst [vmem:[%s225 + $0x34] sm:$0xf] %v422
        %439 = vst [vmem:[%s225 + $0x38] sm:$0xf] %v423
        %440 = vst [vmem:[%s225 + $0x3c] sm:$0xf] %v424
        %s441 = sand.u32 %s113, 1
        %s442 = scalar_lea.sflag [#allocation4], %s441
        %s443 = sand.u32 %s113, 1
        %s444 = smul.addr %s443, 64
        %s445 = scalar_lea.vmem [#allocation7], %s444
        // Predicated region
        $region41: #{tpu_custom_call.1} parent=31 // pred_check
          %p446 = pneg %p123
        $region42: #{tpu_custom_call.1} parent=31 // pred_check_branch
          %448 = sbr.rel (%p446) target = $region44
        $region43: #{tpu_custom_call.1} parent=31 // pred_region
          %s449 = smul.u32 16, %s26
          %451 = vsyncadd %s442, 0
          %s452 = smul.addr %s25, 32
          %s453 = sadd.s32 %s449, %s452
          %s454 = smul.addr %s453, 4
          %s455 = scalar_lea.hbm %s3, %s454
          %s456 = sshll.u32 %s445, 4
          %s457 = int_to_ptr.vmem [resolvable:$true] %s456
          %s458 = sshll.u32 %s455, 4
          %s459 = int_to_ptr.hbm [resolvable:$true] %s458
          %464 = dma.vmem_to_hbm [thread:$0]  %s457, 1024, %s459, %s442, 64, 64, 4
        $region44: #{tpu_custom_call.1} parent=31 // pred_fallthru
          _
      $region32: #{tpu_custom_call.1} parent=5 // pred_fallthru
        _
      %p465 = scmp.le.s32.totalorder 2, %s16
      // Predicated region
      $region45: #{tpu_custom_call.1} parent=5 // pred_check
        %p466 = pneg %p465
      $region46: #{tpu_custom_call.1} parent=5 // pred_check_branch
        %468 = sbr.rel (%p466) target = $region48
      $region47: #{tpu_custom_call.1} parent=5 // pred_region
        %s469 = ssub.s32 %s16, 2
        // Predicated region
        $region49: #{tpu_custom_call.1} parent=47 // pred_check
          %p470 = pneg %p129
        $region50: #{tpu_custom_call.1} parent=47 // pred_check_branch
          %472 = sbr.rel (%p470) target = $region52
        $region51: #{tpu_custom_call.1} parent=47 // pred_region
          %s473 = sand.u32 %s114, 1
          %s474 = scalar_lea.sflag [#allocation4], %s473
          %s475 = sand.u32 %s114, 1
          %s476 = smul.addr %s475, 64
          %s477 = scalar_lea.vmem [#allocation7], %s476
          %479 = dma.done %s474, 1024
        $region52: #{tpu_custom_call.1} parent=47 // pred_fallthru
          _
      $region48: #{tpu_custom_call.1} parent=5 // pred_fallthru
        _
    $region6: #{tpu_custom_call.1} parent=1 // loop_footer
      %s20 = sadd.s32 1, %s16
    $region7: #{tpu_custom_call.1} parent=1 // loop_footer_branch
      %15 = sbr.rel target = $region3
    $region8: #{tpu_custom_call.1} parent=1 // loop_exit
      _
    %480 = vsyncpa [#allocation3], 1
    %s481 = scalar_lea.sflag [#allocation3], 1
    %482 = vsyncpa %s481, 1
    %483 = vsyncpa [#allocation6], 1
    %484 = vsyncpa [#allocation4], 1
    %s485 = scalar_lea.sflag [#allocation4], 1
    %486 = vsyncpa %s485, 1

</llo_original>
